<compile_context>
chip_gen: v6e
topology: v6e:2x2x1
jax: 0.10.0
libtpu: 0.0.40
codegen_flags: <defaults>
</compile_context>

<pallas_src>
import functools

import jax
import jax.numpy as jnp
from jax import lax
from jax.experimental import pallas as pl
from jax.experimental.pallas import tpu as pltpu


def _uniform_noise(key, shape):
    """U ~ Uniform[0,1) like torch.rand, clamped away from 0 so log(U) is finite."""
    u = jax.random.uniform(key, shape, dtype=jnp.float32)
    return jnp.maximum(u, jnp.float32(1e-12))


def _gumbel_softmax_kernel(x_ref, u_ref, o_ref, *, inv_tau, straight_through):
    # Block shape: (1, C, h_tile, w_tile).  The class axis (axis=1) is a major,
    # non-tiled axis, so reductions over it are cheap and DMAs carry no sublane
    # padding even when C < 8.
    x = x_ref[...].astype(jnp.float32)
    u = u_ref[...]                                   # f32 uniform in (0, 1)
    g = -jnp.log(-jnp.log(u))                        # Gumbel(0, 1) noise

    # softmax((log_softmax(x)+g)/tau) == softmax((x+g)/tau): the per-pixel lse is
    # a constant shift over the class axis and cancels -> skip the log_softmax pass.
    y = x + g

    if straight_through:
        # Forward value of the ST estimator: hard one-hot at argmax(y) over classes.
        # First-argmax tie-break via iota (exact 1.0/0.0 output, no divide).
        # TODO(synk): PyTorch's ST *gradient* (flows through the soft sample) needs
        # a jax.custom_vjp wrapper; only the forward value is implemented here.
        ymax = jnp.max(y, axis=1, keepdims=True)
        cls = lax.broadcasted_iota(jnp.int32, y.shape, 1)
        first = jnp.min(jnp.where(y >= ymax, cls, jnp.int32(2 ** 30)),
                        axis=1, keepdims=True)
        o_ref[...] = (cls == first).astype(o_ref.dtype)
    else:
        ys = y * jnp.float32(inv_tau)
        m = jnp.max(ys, axis=1, keepdims=True)
        e = jnp.exp(ys - m)
        # Plain divide (lowers everywhere, incl. the interpret path); the kernel is
        # HBM-bound so the extra VPU work is hidden on v5e/v6e and minor on v7x.
        inv_den = 1.0 / jnp.sum(e, axis=1, keepdims=True)
        o_ref[...] = (e * inv_den).astype(o_ref.dtype)


def _choose_tiles(C, H, W, itemsize, target_traffic_bytes=3 << 20):
    """Pick (h_tile, w_tile) for a (1, C, h_tile, w_tile) block.

    Sized so TOTAL per-block HBM traffic (logits in + f32 uniform in + out) is
    ~2-4 MiB: the ~0.35 us fixed per-grid-step cost stays <10% of step time even
    at v7x bandwidth, while the double-buffered VMEM footprint stays far under
    the 48 MiB cap.  w_tile is the full W (always layout-legal) or a multiple of
    128; h_tile is a multiple of 8 or the full H.  Ragged tails are handled by a
    cdiv grid, so no divisibility of H or W is required.
    """
    per_elem = 2 * itemsize + 4                       # x in + out + f32 uniform in
    budget = max(1, target_traffic_bytes // (C * per_elem))  # H*W elems per class

    if W <= 128 or W * 8 <= budget:
        w_tile = W                                    # lane-dense when W % 128 == 0
    else:
        w_tile = max(128, ((budget // 8) // 128) * 128)

    h_budget = max(1, budget // w_tile)
    if h_budget >= H:
        h_tile = H
    else:
        h_tile = (h_budget // 8) * 8
        if h_tile < 8:
            h_tile = min(8, H)
    return int(h_tile), int(w_tile)


def gumbel_softmax(logits_nchw, noise_key, *, tau, straight_through=False):
    """Gumbel-Softmax over dim=1 of an NCHW tensor (matches Gumble_Softmax.forward).

    The uniform noise is drawn deterministically from `noise_key` in the wrapper
    and streamed into the kernel; the Gumbel transform, (optional) tempered
    softmax and the straight-through hard sample are fused in the kernel.
    """
    N, C, H, W = logits_nchw.shape
    u = _uniform_noise(noise_key, logits_nchw.shape)

    itemsize = int(jnp.dtype(logits_nchw.dtype).itemsize)
    h_tile, w_tile = _choose_tiles(C, H, W, itemsize)
    grid = (N, pl.cdiv(H, h_tile), pl.cdiv(W, w_tile))

    blk = (1, C, h_tile, w_tile)
    idx = lambda n, i, j: (n, 0, i, j)
    x_spec = pl.BlockSpec(blk, idx)
    u_spec = pl.BlockSpec(blk, idx)
    o_spec = pl.BlockSpec(blk, idx)

    # VMEM budget derived from the actual (double-buffered) block buffers plus
    # headroom for whole-block f32 temporaries; clamped to 48 MiB for v7x.
    elems = C * h_tile * w_tile
    block_traffic = elems * (2 * itemsize + 4)
    vmem_limit = int(min(48 << 20, max(16 << 20, 4 * block_traffic + (4 << 20))))

    total = N * C * H * W
    cost = pl.CostEstimate(
        flops=10 * total,
        transcendentals=3 * total,
        bytes_accessed=total * (2 * itemsize + 4),
    )

    kernel = functools.partial(
        _gumbel_softmax_kernel,
        inv_tau=1.0 / float(tau),
        straight_through=bool(straight_through),
    )

    return pl.pallas_call(
        kernel,
        out_shape=jax.ShapeDtypeStruct((N, C, H, W), logits_nchw.dtype),
        grid_spec=pltpu.PrefetchScalarGridSpec(
            num_scalar_prefetch=0,
            grid=grid,
            in_specs=[x_spec, u_spec],
            out_specs=o_spec,
        ),
        compiler_params=pltpu.CompilerParams(
            dimension_semantics=("parallel", "parallel", "parallel"),
            vmem_limit_bytes=vmem_limit,
        ),
        cost_estimate=cost,
    )(logits_nchw, u)


if __name__ == "__main__":
    key = jax.random.PRNGKey(0)
    k_logits, k_noise = jax.random.split(key)

    N, C, H, W = 2, 4, 16, 16
    logits = jax.random.normal(k_logits, (N, C, H, W), dtype=jnp.float32)
    tau = 0.5

    # Soft path.
    out = jax.block_until_ready(gumbel_softmax(logits, k_noise, tau=tau))
    assert out.shape == (N, C, H, W)
    assert out.dtype == logits.dtype

    # Reference with the exact same uniform draw (deterministic from k_noise).
    u = _uniform_noise(k_noise, logits.shape)
    g = -jnp.log(-jnp.log(u))
    ref = jax.nn.softmax((jax.nn.log_softmax(logits, axis=1) + g) / tau, axis=1)
    assert jnp.allclose(out, ref, atol=1e-2, rtol=1e-2)
    assert jnp.allclose(jnp.sum(out, axis=1), 1.0, atol=1e-3)
    assert bool(jnp.all(out >= 0.0)) and bool(jnp.all(out <= 1.0 + 1e-5))

    # Determinism: same key -> same sample.
    out2 = jax.block_until_ready(gumbel_softmax(logits, k_noise, tau=tau))
    assert jnp.allclose(out, out2)

    # Straight-through path: forward value is a one-hot over C at argmax(y).
    out_st = jax.block_until_ready(
        gumbel_softmax(logits, k_noise, tau=tau, straight_through=True)
    )
    y_ref = jax.nn.log_softmax(logits, axis=1) + g
    hard_ref = jax.nn.one_hot(jnp.argmax(y_ref, axis=1), C, axis=1, dtype=out_st.dtype)
    assert jnp.allclose(out_st, hard_ref, atol=1e-6)
    assert jnp.allclose(jnp.sum(out_st, axis=1), 1.0)

    print("KERNEL_OK")
</pallas_src>

<mosaic_0001>
module attributes {stable_mosaic.version = 11 : i64} {
  func.func @_gumbel_softmax_kernel(%arg0: i32, %arg1: i32, %arg2: i32, %arg3: memref<1x4x16x16xf32, #tpu.memory_space<vmem>>, %arg4: memref<1x4x16x16xf32, #tpu.memory_space<vmem>>, %arg5: memref<1x4x16x16xf32, #tpu.memory_space<vmem>>) attributes {dimension_semantics = [#tpu.dimension_semantics<parallel>, #tpu.dimension_semantics<parallel>, #tpu.dimension_semantics<parallel>], iteration_bounds = array<i64: 2, 1, 1>, scalar_prefetch = 0 : i64, scratch_operands = 0 : i64, tpu.core_type = #tpu.core_type<tc>, window_params = [{transform_indices = @transform_0, window_bounds = array<i64: 1, 4, 16, 16>}, {transform_indices = @transform_1, window_bounds = array<i64: 1, 4, 16, 16>}, {transform_indices = @transform_2, window_bounds = array<i64: 1, 4, 16, 16>}]} {
    %c0 = arith.constant 0 : index
    %c0_0 = arith.constant 0 : index
    %c0_1 = arith.constant 0 : index
    %c0_2 = arith.constant 0 : index
    %0 = vector.load %arg3[%c0, %c0_0, %c0_1, %c0_2] : memref<1x4x16x16xf32, #tpu.memory_space<vmem>>, vector<1x4x16x16xf32>
    %c0_3 = arith.constant 0 : index
    %c0_4 = arith.constant 0 : index
    %c0_5 = arith.constant 0 : index
    %c0_6 = arith.constant 0 : index
    %1 = vector.load %arg4[%c0_3, %c0_4, %c0_5, %c0_6] : memref<1x4x16x16xf32, #tpu.memory_space<vmem>>, vector<1x4x16x16xf32>
    %2 = math.log %1 : vector<1x4x16x16xf32>
    %cst = arith.constant 0.000000e+00 : f32
    %3 = vector.broadcast %cst : f32 to vector<1x4x16x16xf32>
    %4 = arith.subf %3, %2 : vector<1x4x16x16xf32>
    %5 = math.log %4 : vector<1x4x16x16xf32>
    %cst_7 = arith.constant 0.000000e+00 : f32
    %6 = vector.broadcast %cst_7 : f32 to vector<1x4x16x16xf32>
    %7 = arith.subf %6, %5 : vector<1x4x16x16xf32>
    %8 = arith.addf %0, %7 : vector<1x4x16x16xf32>
    %cst_8 = arith.constant 2.000000e+00 : f32
    %9 = vector.broadcast %cst_8 : f32 to vector<1x4x16x16xf32>
    %10 = arith.mulf %8, %9 : vector<1x4x16x16xf32>
    %cst_9 = arith.constant dense<0xFF800000> : vector<1x16x16xf32>
    %11 = vector.multi_reduction <maximumf>, %10, %cst_9 [1] : vector<1x4x16x16xf32> to vector<1x16x16xf32>
    %12 = vector.shape_cast %11 : vector<1x16x16xf32> to vector<1x1x16x16xf32>
    %13 = vector.broadcast %12 : vector<1x1x16x16xf32> to vector<1x4x16x16xf32>
    %14 = arith.subf %10, %13 : vector<1x4x16x16xf32>
    %15 = math.exp %14 : vector<1x4x16x16xf32>
    %cst_10 = arith.constant dense<0.000000e+00> : vector<1x16x16xf32>
    %16 = vector.multi_reduction <add>, %15, %cst_10 [1] : vector<1x4x16x16xf32> to vector<1x16x16xf32>
    %17 = vector.shape_cast %16 : vector<1x16x16xf32> to vector<1x1x16x16xf32>
    %cst_11 = arith.constant 1.000000e+00 : f32
    %18 = vector.broadcast %cst_11 : f32 to vector<1x1x16x16xf32>
    %19 = arith.divf %18, %17 : vector<1x1x16x16xf32>
    %20 = vector.broadcast %19 : vector<1x1x16x16xf32> to vector<1x4x16x16xf32>
    %21 = arith.mulf %15, %20 : vector<1x4x16x16xf32>
    %c0_12 = arith.constant 0 : index
    %c0_13 = arith.constant 0 : index
    %c0_14 = arith.constant 0 : index
    %c0_15 = arith.constant 0 : index
    %22 = vector.load %arg5[%c0_12, %c0_13, %c0_14, %c0_15] : memref<1x4x16x16xf32, #tpu.memory_space<vmem>>, vector<1x4x16x16xf32>
    tpu.vector_store %arg5[%c0_12, %c0_13, %c0_14, %c0_15], %21 {strides = array<i32>} : memref<1x4x16x16xf32, #tpu.memory_space<vmem>>, vector<1x4x16x16xf32>,
    return
  }
  func.func @transform_0(%arg0: i32, %arg1: i32, %arg2: i32) -> (i32, i32, i32, i32) {
    %c0_i32 = arith.constant 0 : i32
    %c0_i32_0 = arith.constant 0 : i32
    return %arg0, %c0_i32, %arg1, %arg2 : i32, i32, i32, i32
  }
  func.func @transform_1(%arg0: i32, %arg1: i32, %arg2: i32) -> (i32, i32, i32, i32) {
    %c0_i32 = arith.constant 0 : i32
    %c0_i32_0 = arith.constant 0 : i32
    return %arg0, %c0_i32, %arg1, %arg2 : i32, i32, i32, i32
  }
  func.func @transform_2(%arg0: i32, %arg1: i32, %arg2: i32) -> (i32, i32, i32, i32) {
    %c0_i32 = arith.constant 0 : i32
    %c0_i32_0 = arith.constant 0 : i32
    return %arg0, %c0_i32, %arg1, %arg2 : i32, i32, i32, i32
  }
}

</mosaic_0001>

<llo_original>
// kernel: tpu_custom_call.1
$region0: #{tpu_custom_call.1}
  #allocation0 [shape = 'u32[]', space=smem, size = 0x4, offset = 0x4, fixed_abs, tag = 'smem constant byte address 0x4 - core index']
  #allocation1 [shape = 'u32[144,128]{1,0:T(1,128)}', space=vmem, size = 0x12000, scoped, tag = 'internal scratch']
  %s0 = inlined_call_operand.hbm [shape: f32[2,4,16,16], index: 0, kind: input, shape index: {}]
  %s1 = inlined_call_operand.hbm [shape: f32[2,4,16,16], index: 1, kind: input, shape index: {}]
  %s2 = inlined_call_operand.hbm [shape: f32[2,4,16,16], index: 2, kind: output, shape index: {}]
  %s3 = sld [smem:[#allocation0]]
  $region49: #{tpu_custom_call.1} parent=0
    _
  %s5 = ssub.s32 1, %s3
  %s6 = scalar_select 0, %s5, %s3
  $region1: #{tpu_custom_call.1} parent=0
    #allocation2 [shape = 'u8[65536]{0}', space=vmem, size = 0x10000, scoped, tag = 'input window, operand 0']
    #allocation3 [shape = 's32[2]{0}', space=sflag, size = 0x8, scoped, tag = 'scoped memory for tpu_custom_call.1']
    #allocation4 [shape = 's32[2]{0}', space=sflag, size = 0x8, scoped, tag = 'scoped memory for tpu_custom_call.1']
    #allocation5 [shape = 'u8[65536]{0}', space=vmem, size = 0x10000, scoped, tag = 'input window, operand 1']
    #allocation6 [shape = 's32[2]{0}', space=sflag, size = 0x8, scoped, tag = 'scoped memory for tpu_custom_call.1']
    #allocation7 [shape = 'u8[65536]{0}', space=vmem, size = 0x10000, scoped, tag = 'output window, operand 0']
    %7 = vsyncpa [#allocation3], 0
    %s8 = scalar_lea.sflag [#allocation3], 1
    %9 = vsyncpa %s8, 0
    %10 = vsyncpa [#allocation6], 0
    %s11 = scalar_lea.sflag [#allocation6], 1
    %12 = vsyncpa %s11, 0
    %13 = vsyncpa [#allocation4], 0
    %s14 = scalar_lea.sflag [#allocation4], 1
    %15 = vsyncpa %s14, 0
    loop: start=0, step=1, limit=4
    $region2: #{tpu_custom_call.1} parent=1 // loop_pre_header
      _
    $region3: #{tpu_custom_call.1} parent=1 // loop_header
      %s17 = sphi 0, %s21
      %p18 = scmp.ge.s32.totalorder %s17, 4
      %s24 = sphi 0, %s43
      %s25 = sphi 0, %s39
      %s26 = sphi 0, %s35
      %s27 = sphi 0, %s24
      %s28 = sphi 0, %s25
      %s29 = sphi 0, %s26
      %s30 = sphi 0, %s27
      %s31 = sphi 0, %s28
      %s32 = sphi 0, %s29
      %s50 = sphi 0, %s52
      %s53 = sphi 0, %s50
      %s54 = sphi 0, %s53
      %s70 = sphi 0, %s54
      %s80 = sphi 0, %s82
      %s83 = sphi 0, %s80
      %s84 = sphi 0, %s83
      %s100 = sphi 0, %s84
      %s110 = sphi 0, %s112
      %s113 = sphi 0, %s110
      %s114 = sphi 0, %s113
      %s130 = sphi 0, %s114
    $region4: #{tpu_custom_call.1} parent=1 // loop_header_branch
      %20 = sbr.rel (%p18) target = $region8
    $region5: #{tpu_custom_call.1} parent=1 // loop_body
      %s22 = ssub.s32 %s17, 1
      %s23 = ssub.s32 %s17, 2
      %s33 = sadd.s32 1, %s26
      %p34 = scmp.ge.s32.totalorder %s33, 1
      %s35 = scalar_select %p34, 0, %s33
      %s36 = sadd.s32 1, %s25
      %s37 = scalar_select %p34, %s36, %s25
      %p38 = scmp.ge.s32.totalorder %s37, 1
      %s39 = scalar_select %p38, 0, %s37
      %s40 = sadd.s32 1, %s24
      %s41 = scalar_select %p38, %s40, %s24
      %p42 = scmp.ge.s32.totalorder %s41, 2
      %s43 = scalar_select %p42, 0, %s41
      %s44 = ssub.s32 %s24, %s43
      %s45 = ssub.s32 %s25, %s39
      %s46 = sor.u32 %s44, %s45
      %s47 = ssub.s32 %s26, %s35
      %s48 = sor.u32 %s46, %s47
      %p49 = scmp.eq.s32.totalorder %s48, 0
      %s51 = sadd.s32 %s50, 1
      %s52 = scalar_select %p49, %s50, %s51
      %p55 = pneg %p49
      %p56 = scmp.eq.s32.totalorder %s17, 1
      %p57 = por %p55, %p56
      %p58 = scmp.ne.s32.totalorder %s50, %s53
      %p59 = scmp.eq.s32.totalorder %s17, 0
      %p60 = por %p58, %p59
      %p61 = scmp.ne.s32.totalorder %s50, %s53
      %p62 = scmp.eq.s32.totalorder %s22, 1
      %p63 = por %p61, %p62
      %p64 = scmp.ne.s32.totalorder %s53, %s54
      %p65 = scmp.eq.s32.totalorder %s22, 0
      %p66 = por %p64, %p65
      %p67 = scmp.ne.s32.totalorder %s53, %s54
      %p68 = scmp.eq.s32.totalorder %s23, 1
      %p69 = por %p67, %p68
      %p71 = scmp.ne.s32.totalorder %s54, %s70
      %p72 = scmp.eq.s32.totalorder %s23, 0
      %p73 = por %p71, %p72
      %s74 = ssub.s32 %s24, %s43
      %s75 = ssub.s32 %s25, %s39
      %s76 = sor.u32 %s74, %s75
      %s77 = ssub.s32 %s26, %s35
      %s78 = sor.u32 %s76, %s77
      %p79 = scmp.eq.s32.totalorder %s78, 0
      %s81 = sadd.s32 %s80, 1
      %s82 = scalar_select %p79, %s80, %s81
      %p85 = pneg %p79
      %p86 = scmp.eq.s32.totalorder %s17, 1
      %p87 = por %p85, %p86
      %p88 = scmp.ne.s32.totalorder %s80, %s83
      %p89 = scmp.eq.s32.totalorder %s17, 0
      %p90 = por %p88, %p89
      %p91 = scmp.ne.s32.totalorder %s80, %s83
      %p92 = scmp.eq.s32.totalorder %s22, 1
      %p93 = por %p91, %p92
      %p94 = scmp.ne.s32.totalorder %s83, %s84
      %p95 = scmp.eq.s32.totalorder %s22, 0
      %p96 = por %p94, %p95
      %p97 = scmp.ne.s32.totalorder %s83, %s84
      %p98 = scmp.eq.s32.totalorder %s23, 1
      %p99 = por %p97, %p98
      %p101 = scmp.ne.s32.totalorder %s84, %s100
      %p102 = scmp.eq.s32.totalorder %s23, 0
      %p103 = por %p101, %p102
      %s104 = ssub.s32 %s24, %s43
      %s105 = ssub.s32 %s25, %s39
      %s106 = sor.u32 %s104, %s105
      %s107 = ssub.s32 %s26, %s35
      %s108 = sor.u32 %s106, %s107
      %p109 = scmp.eq.s32.totalorder %s108, 0
      %s111 = sadd.s32 %s110, 1
      %s112 = scalar_select %p109, %s110, %s111
      %p115 = pneg %p109
      %p116 = scmp.eq.s32.totalorder %s17, 1
      %p117 = por %p115, %p116
      %p118 = scmp.ne.s32.totalorder %s110, %s113
      %p119 = scmp.eq.s32.totalorder %s17, 0
      %p120 = por %p118, %p119
      %p121 = scmp.ne.s32.totalorder %s110, %s113
      %p122 = scmp.eq.s32.totalorder %s22, 1
      %p123 = por %p121, %p122
      %p124 = scmp.ne.s32.totalorder %s113, %s114
      %p125 = scmp.eq.s32.totalorder %s22, 0
      %p126 = por %p124, %p125
      %p127 = scmp.ne.s32.totalorder %s113, %s114
      %p128 = scmp.eq.s32.totalorder %s23, 1
      %p129 = por %p127, %p128
      %p131 = scmp.ne.s32.totalorder %s114, %s130
      %p132 = scmp.eq.s32.totalorder %s23, 0
      %p133 = por %p131, %p132
      %p134 = scmp.le.s32.totalorder 1, %s17
      %p135 = scmp.lt.s32.totalorder %s17, 3
      %p136 = pnand %p134, %p135
      %p137 = pneg %p136
      // Predicated region
      $region9: #{tpu_custom_call.1} parent=5 // pred_check
        _
      $region10: #{tpu_custom_call.1} parent=5 // pred_check_branch
        %139 = sbr.rel (%p136) target = $region12
      $region11: #{tpu_custom_call.1} parent=5 // pred_region
        %s140 = ssub.s32 %s17, 1
      $region12: #{tpu_custom_call.1} parent=5 // pred_fallthru
        _
      %p141 = scmp.lt.s32.totalorder %s17, 2
      // Predicated region
      $region13: #{tpu_custom_call.1} parent=5 // pred_check
        %p142 = pneg %p141
      $region14: #{tpu_custom_call.1} parent=5 // pred_check_branch
        %144 = sbr.rel (%p142) target = $region16
      $region15: #{tpu_custom_call.1} parent=5 // pred_region
        // Predicated region
        $region17: #{tpu_custom_call.1} parent=15 // pred_check
          %p145 = pneg %p60
        $region18: #{tpu_custom_call.1} parent=15 // pred_check_branch
          %147 = sbr.rel (%p145) target = $region20
        $region19: #{tpu_custom_call.1} parent=15 // pred_region
          %s148 = sand.u32 %s50, 1
          %s149 = scalar_lea.sflag [#allocation3], %s148
          %s150 = sand.u32 %s50, 1
          %s151 = smul.addr %s150, 64
          %s152 = scalar_lea.vmem [#allocation2], %s151
          %s153 = smul.u32 2, %s25
          %s155 = ssub.s32 1024, 1024
          %156 = vsyncadd %s149, %s155
          %s157 = sadd.s32 %s26, %s153
          %s158 = smul.addr %s24, 8
          %s159 = sadd.s32 %s157, %s158
          %s160 = smul.addr %s159, 128
          %s161 = scalar_lea.hbm %s0, %s160
          %s162 = sshll.u32 %s152, 4
          %s163 = int_to_ptr.vmem [resolvable:$true] %s162
          %168 = dma.hbm_to_vmem [thread:$0]  %s161, 1024, %s163, %s149, 128, 128, 8
        $region20: #{tpu_custom_call.1} parent=15 // pred_fallthru
          _
        // Predicated region
        $region21: #{tpu_custom_call.1} parent=15 // pred_check
          %p169 = pneg %p90
        $region22: #{tpu_custom_call.1} parent=15 // pred_check_branch
          %171 = sbr.rel (%p169) target = $region24
        $region23: #{tpu_custom_call.1} parent=15 // pred_region
          %s172 = sand.u32 %s80, 1
          %s173 = scalar_lea.sflag [#allocation6], %s172
          %s174 = sand.u32 %s80, 1
          %s175 = smul.addr %s174, 64
          %s176 = scalar_lea.vmem [#allocation5], %s175
          %s177 = smul.u32 2, %s25
          %s179 = ssub.s32 1024, 1024
          %180 = vsyncadd %s173, %s179
          %s181 = sadd.s32 %s26, %s177
          %s182 = smul.addr %s24, 8
          %s183 = sadd.s32 %s181, %s182
          %s184 = smul.addr %s183, 128
          %s185 = scalar_lea.hbm %s1, %s184
          %s186 = sshll.u32 %s176, 4
          %s187 = int_to_ptr.vmem [resolvable:$true] %s186
          %192 = dma.hbm_to_vmem [thread:$0]  %s185, 1024, %s187, %s173, 128, 128, 8
        $region24: #{tpu_custom_call.1} parent=15 // pred_fallthru
          _
      $region16: #{tpu_custom_call.1} parent=5 // pred_fallthru
        _
      %p193 = scmp.le.s32.totalorder 1, %s17
      %p194 = scmp.lt.s32.totalorder %s17, 3
      %p195 = pnand %p193, %p194
      %p196 = pneg %p195
      // Predicated region
      $region25: #{tpu_custom_call.1} parent=5 // pred_check
        _
      $region26: #{tpu_custom_call.1} parent=5 // pred_check_branch
        %198 = sbr.rel (%p195) target = $region28
      $region27: #{tpu_custom_call.1} parent=5 // pred_region
        %s199 = ssub.s32 %s17, 1
        %s200 = sand.u32 %s53, 1
        %s201 = scalar_lea.sflag [#allocation3], %s200
        %s202 = sand.u32 %s53, 1
        %s203 = smul.addr %s202, 64
        %s204 = scalar_lea.vmem [#allocation2], %s203
        // Predicated region
        $region29: #{tpu_custom_call.1} parent=27 // pred_check
          %p205 = pneg %p66
        $region30: #{tpu_custom_call.1} parent=27 // pred_check_branch
          %207 = sbr.rel (%p205) target = $region32
        $region31: #{tpu_custom_call.1} parent=27 // pred_region
          %208 = dma.done %s201, 1024
        $region32: #{tpu_custom_call.1} parent=27 // pred_fallthru
          _
        %s209 = sand.u32 %s83, 1
        %s210 = scalar_lea.sflag [#allocation6], %s209
        %s211 = sand.u32 %s83, 1
        %s212 = smul.addr %s211, 64
        %s213 = scalar_lea.vmem [#allocation5], %s212
        // Predicated region
        $region33: #{tpu_custom_call.1} parent=27 // pred_check
          %p214 = pneg %p96
        $region34: #{tpu_custom_call.1} parent=27 // pred_check_branch
          %216 = sbr.rel (%p214) target = $region36
        $region35: #{tpu_custom_call.1} parent=27 // pred_region
          %217 = dma.done %s210, 1024
        $region36: #{tpu_custom_call.1} parent=27 // pred_fallthru
          _
        %s218 = sand.u32 %s53, 1
        %s219 = scalar_lea.sflag [#allocation3], %s218
        %s220 = sand.u32 %s53, 1
        %s221 = smul.addr %s220, 64
        %s222 = scalar_lea.vmem [#allocation2], %s221
        %p223 = pneg %p66
        %p224 = pneg %p63
        %s225 = sand.u32 %s83, 1
        %s226 = scalar_lea.sflag [#allocation6], %s225
        %s227 = sand.u32 %s83, 1
        %s228 = smul.addr %s227, 64
        %s229 = scalar_lea.vmem [#allocation5], %s228
        %p230 = pneg %p96
        %p231 = pneg %p93
        %p232 = pneg %p126
        %p233 = pneg %p123
        %s234 = sand.u32 %s113, 1
        %s235 = scalar_lea.sflag [#allocation4], %s234
        %s236 = sand.u32 %s113, 1
        %s237 = smul.addr %s236, 64
        %s238 = scalar_lea.vmem [#allocation7], %s237
        %s239 = smul.u32 2, %s28
        %s240 = smul.u32 2, %s28
        %s241 = smul.u32 2, %s28
        %v242 = vld [vmem:[%s204] sm:$0xff]
        %v243 = vld [vmem:[%s204 + $0x8] sm:$0xff]
        %v244 = vld [vmem:[%s204 + $0x10] sm:$0xff]
        %v245 = vld [vmem:[%s204 + $0x18] sm:$0xff]
        %v246 = vld [vmem:[%s204 + $0x20] sm:$0xff]
        %v247 = vld [vmem:[%s204 + $0x28] sm:$0xff]
        %v248 = vld [vmem:[%s204 + $0x30] sm:$0xff]
        %v249 = vld [vmem:[%s204 + $0x38] sm:$0xff]
        %v250 = vld [vmem:[%s213] sm:$0xff]
        %v251 = vld [vmem:[%s213 + $0x8] sm:$0xff]
        %v252 = vld [vmem:[%s213 + $0x10] sm:$0xff]
        %v253 = vld [vmem:[%s213 + $0x18] sm:$0xff]
        %v254 = vld [vmem:[%s213 + $0x20] sm:$0xff]
        %v255 = vld [vmem:[%s213 + $0x28] sm:$0xff]
        %v256 = vld [vmem:[%s213 + $0x30] sm:$0xff]
        %v257 = vld [vmem:[%s213 + $0x38] sm:$0xff]
        %v258 = vlog2.pop %v250
        %v259 = vmul.f32 %v258, 0.6931472
        %v260 = vlog2.pop %v251
        %v261 = vmul.f32 %v260, 0.6931472
        %v262 = vlog2.pop %v252
        %v263 = vmul.f32 %v262, 0.6931472
        %v264 = vlog2.pop %v253
        %v265 = vmul.f32 %v264, 0.6931472
        %v266 = vlog2.pop %v254
        %v267 = vmul.f32 %v266, 0.6931472
        %v268 = vlog2.pop %v255
        %v269 = vmul.f32 %v268, 0.6931472
        %v270 = vlog2.pop %v256
        %v271 = vmul.f32 %v270, 0.6931472
        %v272 = vlog2.pop %v257
        %v273 = vmul.f32 %v272, 0.6931472
        %v274 = vsub.f32 0.0, %v259
        %v275 = vsub.f32 0.0, %v261
        %v276 = vsub.f32 0.0, %v263
        %v277 = vsub.f32 0.0, %v265
        %v278 = vsub.f32 0.0, %v267
        %v279 = vsub.f32 0.0, %v269
        %v280 = vsub.f32 0.0, %v271
        %v281 = vsub.f32 0.0, %v273
        %v282 = vlog2.pop %v274
        %v283 = vmul.f32 %v282, 0.6931472
        %v284 = vlog2.pop %v275
        %v285 = vmul.f32 %v284, 0.6931472
        %v286 = vlog2.pop %v276
        %v287 = vmul.f32 %v286, 0.6931472
        %v288 = vlog2.pop %v277
        %v289 = vmul.f32 %v288, 0.6931472
        %v290 = vlog2.pop %v278
        %v291 = vmul.f32 %v290, 0.6931472
        %v292 = vlog2.pop %v279
        %v293 = vmul.f32 %v292, 0.6931472
        %v294 = vlog2.pop %v280
        %v295 = vmul.f32 %v294, 0.6931472
        %v296 = vlog2.pop %v281
        %v297 = vmul.f32 %v296, 0.6931472
        %v298 = vsub.f32 0.0, %v283
        %v299 = vsub.f32 0.0, %v285
        %v300 = vsub.f32 0.0, %v287
        %v301 = vsub.f32 0.0, %v289
        %v302 = vsub.f32 0.0, %v291
        %v303 = vsub.f32 0.0, %v293
        %v304 = vsub.f32 0.0, %v295
        %v305 = vsub.f32 0.0, %v297
        %v306 = vadd.f32 %v242, %v298
        %v307 = vadd.f32 %v243, %v299
        %v308 = vadd.f32 %v244, %v300
        %v309 = vadd.f32 %v245, %v301
        %v310 = vadd.f32 %v246, %v302
        %v311 = vadd.f32 %v247, %v303
        %v312 = vadd.f32 %v248, %v304
        %v313 = vadd.f32 %v249, %v305
        %v314 = vmul.f32 %v306, 2.0
        %v315 = vmul.f32 %v307, 2.0
        %v316 = vmul.f32 %v308, 2.0
        %v317 = vmul.f32 %v309, 2.0
        %v318 = vmul.f32 %v310, 2.0
        %v319 = vmul.f32 %v311, 2.0
        %v320 = vmul.f32 %v312, 2.0
        %v321 = vmul.f32 %v313, 2.0
        %vm322 = vcmask 130048
        %v323 = vsel %vm322, %v314, -inf
        %v324 = vsel %vm322, %v316, -inf
        %v325 = vsel %vm322, %v318, -inf
        %v326 = vmax.f32 %v323, %v325
        %v327 = vsel %vm322, %v320, -inf
        %v328 = vmax.f32 %v324, %v327
        %v329 = vmax.f32 %v326, %v328
        %v330 = vsel %vm322, %v315, -inf
        %v331 = vsel %vm322, %v317, -inf
        %v332 = vsel %vm322, %v319, -inf
        %v333 = vmax.f32 %v330, %v332
        %v334 = vsel %vm322, %v321, -inf
        %v335 = vmax.f32 %v331, %v334
        %v336 = vmax.f32 %v333, %v335
        %v337 = vsub.f32 %v314, %v329
        %v338 = vsub.f32 %v315, %v336
        %v339 = vsub.f32 %v316, %v329
        %v340 = vsub.f32 %v317, %v336
        %v341 = vsub.f32 %v318, %v329
        %v342 = vsub.f32 %v319, %v336
        %v343 = vsub.f32 %v320, %v329
        %v344 = vsub.f32 %v321, %v336
        %v345 = vmul.f32 %v337, 1.442695
        %v346 = vpow.pop %v345
        %v347 = vmul.f32 %v338, 1.442695
        %v348 = vpow.pop %v347
        %v349 = vmul.f32 %v339, 1.442695
        %v350 = vpow.pop %v349
        %v351 = vmul.f32 %v340, 1.442695
        %v352 = vpow.pop %v351
        %v353 = vmul.f32 %v341, 1.442695
        %v354 = vpow.pop %v353
        %v355 = vmul.f32 %v342, 1.442695
        %v356 = vpow.pop %v355
        %v357 = vmul.f32 %v343, 1.442695
        %v358 = vpow.pop %v357
        %v359 = vmul.f32 %v344, 1.442695
        %v360 = vpow.pop %v359
        %v361 = vsel %vm322, %v346, 0.0
        %v362 = vsel %vm322, %v350, 0.0
        %v363 = vadd.f32 %v361, %v362
        %v364 = vsel %vm322, %v354, 0.0
        %v365 = vadd.f32 %v363, %v364
        %v366 = vsel %vm322, %v358, 0.0
        %v367 = vadd.f32 %v365, %v366
        %v368 = vsel %vm322, %v348, 0.0
        %v369 = vsel %vm322, %v352, 0.0
        %v370 = vadd.f32 %v368, %v369
        %v371 = vsel %vm322, %v356, 0.0
        %v372 = vadd.f32 %v370, %v371
        %v373 = vsel %vm322, %v360, 0.0
        %v374 = vadd.f32 %v372, %v373
        %v375 = vrcp.pop %v367
        %v376 = vmul.f32 1.0, %v375
        %v377 = vrcp.pop %v374
        %v378 = vmul.f32 1.0, %v377
        %v379 = vmul.f32 %v346, %v376
        %v380 = vmul.f32 %v348, %v378
        %v381 = vmul.f32 %v350, %v376
        %v382 = vmul.f32 %v352, %v378
        %v383 = vmul.f32 %v354, %v376
        %v384 = vmul.f32 %v356, %v378
        %v385 = vmul.f32 %v358, %v376
        %v386 = vmul.f32 %v360, %v378
        %387 = vst.msk [vmem:[%s238] sm:$0xff] %vm322, %v379
        %388 = vst.msk [vmem:[%s238 + $0x8] sm:$0xff] %vm322, %v380
        %389 = vst.msk [vmem:[%s238 + $0x10] sm:$0xff] %vm322, %v381
        %390 = vst.msk [vmem:[%s238 + $0x18] sm:$0xff] %vm322, %v382
        %391 = vst.msk [vmem:[%s238 + $0x20] sm:$0xff] %vm322, %v383
        %392 = vst.msk [vmem:[%s238 + $0x28] sm:$0xff] %vm322, %v384
        %393 = vst.msk [vmem:[%s238 + $0x30] sm:$0xff] %vm322, %v385
        %394 = vst.msk [vmem:[%s238 + $0x38] sm:$0xff] %vm322, %v386
        %s395 = sand.u32 %s113, 1
        %s396 = scalar_lea.sflag [#allocation4], %s395
        %s397 = sand.u32 %s113, 1
        %s398 = smul.addr %s397, 64
        %s399 = scalar_lea.vmem [#allocation7], %s398
        // Predicated region
        $region37: #{tpu_custom_call.1} parent=27 // pred_check
          %p400 = pneg %p123
        $region38: #{tpu_custom_call.1} parent=27 // pred_check_branch
          %402 = sbr.rel (%p400) target = $region40
        $region39: #{tpu_custom_call.1} parent=27 // pred_region
          %s403 = smul.u32 2, %s28
          %s405 = ssub.s32 1024, 1024
          %406 = vsyncadd %s396, %s405
          %s407 = sadd.s32 %s29, %s403
          %s408 = smul.addr %s27, 8
          %s409 = sadd.s32 %s407, %s408
          %s410 = smul.addr %s409, 128
          %s411 = scalar_lea.hbm %s2, %s410
          %s412 = sshll.u32 %s399, 4
          %s413 = int_to_ptr.vmem [resolvable:$true] %s412
          %418 = dma.vmem_to_hbm [thread:$0]  %s413, 1024, %s411, %s396, 128, 128, 8
        $region40: #{tpu_custom_call.1} parent=27 // pred_fallthru
          _
      $region28: #{tpu_custom_call.1} parent=5 // pred_fallthru
        _
      %p419 = scmp.le.s32.totalorder 2, %s17
      // Predicated region
      $region41: #{tpu_custom_call.1} parent=5 // pred_check
        %p420 = pneg %p419
      $region42: #{tpu_custom_call.1} parent=5 // pred_check_branch
        %422 = sbr.rel (%p420) target = $region44
      $region43: #{tpu_custom_call.1} parent=5 // pred_region
        %s423 = ssub.s32 %s17, 2
        // Predicated region
        $region45: #{tpu_custom_call.1} parent=43 // pred_check
          %p424 = pneg %p129
        $region46: #{tpu_custom_call.1} parent=43 // pred_check_branch
          %426 = sbr.rel (%p424) target = $region48
        $region47: #{tpu_custom_call.1} parent=43 // pred_region
          %s427 = sand.u32 %s114, 1
          %s428 = scalar_lea.sflag [#allocation4], %s427
          %s429 = sand.u32 %s114, 1
          %s430 = smul.addr %s429, 64
          %s431 = scalar_lea.vmem [#allocation7], %s430
          %432 = dma.done %s428, 1024
        $region48: #{tpu_custom_call.1} parent=43 // pred_fallthru
          _
      $region44: #{tpu_custom_call.1} parent=5 // pred_fallthru
        _
    $region6: #{tpu_custom_call.1} parent=1 // loop_footer
      %s21 = sadd.s32 1, %s17
    $region7: #{tpu_custom_call.1} parent=1 // loop_footer_branch
      %16 = sbr.rel target = $region3
    $region8: #{tpu_custom_call.1} parent=1 // loop_exit
      _
    %433 = vsyncpa [#allocation3], 1
    %s434 = scalar_lea.sflag [#allocation3], 1
    %435 = vsyncpa %s434, 1
    %436 = vsyncpa [#allocation6], 1
    %s437 = scalar_lea.sflag [#allocation6], 1
    %438 = vsyncpa %s437, 1
    %439 = vsyncpa [#allocation4], 1
    %s440 = scalar_lea.sflag [#allocation4], 1
    %441 = vsyncpa %s440, 1

</llo_original>
